<compile_context>
chip_gen: v6e
topology: v6e:2x2x1
jax: 0.10.0
libtpu: 0.0.40
codegen_flags: <defaults>
</compile_context>

<pallas_src>
import math

import jax
import jax.numpy as jnp
from jax.experimental import pallas as pl
from jax.experimental.pallas import tpu as pltpu

LANE = 128
SUBLANE = 8
F32 = jnp.float32


def _round_up(x, m):
    return ((x + m - 1) // m) * m


def _tpu_vmem_capacity_bytes():
    try:
        return int(pltpu.get_tpu_info().vmem_capacity_bytes)
    except Exception:
        return 64 << 20  # conservative fallback: v7x per-TensorCore VMEM


# ---------------------------------------------------------------------------
# one-shot parameter prep: row softmax (lane-axis reduction), gridded over rows
# ---------------------------------------------------------------------------
def _row_softmax_kernel(x_ref, o_ref):
    x = x_ref[...]
    m = jnp.max(x, axis=-1, keepdims=True)
    e = jnp.exp(x - m)
    o_ref[...] = e / jnp.sum(e, axis=-1, keepdims=True)


def _row_softmax(x, *, vmem_ceiling, max_block_rows=256):
    rows, cols = x.shape
    if rows <= max_block_rows:
        tr, xp = rows, x                       # full-extent block, no divisibility constraint
    else:
        tr = max_block_rows                    # multiple of 8
        xp = jnp.pad(x, ((0, _round_up(rows, tr) - rows), (0, 0)))
    rows_p = xp.shape[0]
    need = 2 * 2 * tr * cols * 4               # in + out, double-buffered
    out = pl.pallas_call(
        _row_softmax_kernel,
        out_shape=jax.ShapeDtypeStruct((rows_p, cols), x.dtype),
        grid=(rows_p // tr,),
        in_specs=[pl.BlockSpec((tr, cols), lambda i: (i, 0))],
        out_specs=pl.BlockSpec((tr, cols), lambda i: (i, 0)),
        compiler_params=pltpu.CompilerParams(
            dimension_semantics=("parallel",),
            vmem_limit_bytes=int(min(max(2 * need, 16 << 20), vmem_ceiling)),
        ),
    )(xp)
    return out[:rows] if rows_p != rows else out


# ---------------------------------------------------------------------------
# batched cell:  next = states @ A + inputs @ B^T + init   (f32 accumulate, MXU)
# ---------------------------------------------------------------------------
def hmm_cell_kernel(states_ref, inputs_ref, a_ref, bt_ref, init_ref, out_ref):
    sA = jnp.dot(states_ref[...], a_ref[...], preferred_element_type=jnp.float32)
    iB = jnp.dot(inputs_ref[...], bt_ref[...], preferred_element_type=jnp.float32)
    out_ref[...] = (sA + iB + init_ref[...]).astype(out_ref.dtype)


def _pick_batch_tile(batch, bytes_per_row, budget, max_rows=1024):
    """Batch (M) tile: full batch when small, else a large 128/256-aligned tile."""
    cap = max(SUBLANE, budget // max(bytes_per_row, 1))
    if batch <= min(256, cap):
        return batch                            # one full-extent block
    tm = min(batch, max_rows, cap)
    if tm >= 256:
        tm -= tm % 256                          # fill the 256-wide MXU M dim (v6e/v7x)
    elif tm >= LANE:
        tm -= tm % LANE
    else:
        tm = max(tm - tm % SUBLANE, SUBLANE)
    return tm


def base_hmm_cell_forward(inputs, states, transition, emission, init):
    """Pallas equivalent of BaseHMMCell.forward. Returns (next_states, next_states)."""
    batch, n_states = states.shape
    hidden = inputs.shape[1]

    cap = _tpu_vmem_capacity_bytes()
    vmem_ceiling = int(min(cap * 3 // 4, 100 << 20))   # ~48 MiB v7x, ~96 MiB v5e/v6e
    tile_budget = int(min(cap // 3, 40 << 20))
    resident_budget = int(min(cap // 3, 24 << 20))

    lane_mult = 256 if n_states >= 256 else LANE       # 256-align N once the MXU matters
    n_pad = _round_up(n_states, lane_mult)
    pad = n_pad - n_states

    # --- one-shot parameter prep (hoist this out of any time-scan driving the cell) ---
    A = _row_softmax(transition.astype(F32), vmem_ceiling=vmem_ceiling)   # (S, S)
    B = _row_softmax(emission.astype(F32), vmem_ceiling=vmem_ceiling)     # (S, H)
    a_pad = jnp.pad(A, ((0, 0), (0, pad)))              # pad columns are exact 0
    bt_pad = jnp.pad(B.T, ((0, 0), (0, pad)))           # (H, n_pad), pad columns exact 0
    init_p = jnp.pad(init.astype(F32).reshape(1, n_states), ((0, 0), (0, pad)))

    # --- N (output/state) tiling: keep resident A / B^T / init within budget -----------
    resident_rows = n_states + hidden + 1
    if resident_rows * n_pad * 4 <= resident_budget:
        tn, residents_single_buffered = n_pad, True     # fully resident weights
    else:
        bpc = 2 * resident_rows * 4                     # double-buffered column blocks
        tn = LANE
        for t in range(n_pad, 0, -LANE):
            if n_pad % t == 0 and t * bpc <= resident_budget:
                tn = t
                break
        residents_single_buffered = False
    grid_n = n_pad // tn

    # --- batch (M) tiling ----------------------------------------------------------------
    bytes_per_row = 2 * (n_states + hidden + tn) * 4    # double-buffered streamed tiles
    resident_bytes = (1 if residents_single_buffered else 2) * resident_rows * tn * 4
    tm = _pick_batch_tile(batch, bytes_per_row,
                          budget=max(tile_budget - resident_bytes, 4 << 20))
    grid_b = pl.cdiv(batch, tm)
    batch_p = grid_b * tm
    states_p, inputs_p = states, inputs
    if batch_p != batch:                                # padded tail tile, sliced off below
        states_p = jnp.pad(states, ((0, batch_p - batch), (0, 0)))
        inputs_p = jnp.pad(inputs, ((0, batch_p - batch), (0, 0)))

    need = tm * bytes_per_row + resident_bytes
    vmem_limit = int(min(max(2 * need, 16 << 20), vmem_ceiling))

    def run(single_buffer_residents):
        res_kw = {"pipeline_mode": pl.Buffered(1)} if single_buffer_residents else {}
        return pl.pallas_call(
            hmm_cell_kernel,
            out_shape=jax.ShapeDtypeStruct((batch_p, n_pad), F32),
            grid=(grid_b, grid_n),
            in_specs=[
                pl.BlockSpec((tm, n_states), lambda i, j: (i, 0)),              # states (stream)
                pl.BlockSpec((tm, hidden),   lambda i, j: (i, 0)),              # inputs (stream)
                pl.BlockSpec((n_states, tn), lambda i, j: (0, j), **res_kw),    # A      (resident)
                pl.BlockSpec((hidden, tn),   lambda i, j: (0, j), **res_kw),    # B^T    (resident)
                pl.BlockSpec((1, tn),        lambda i, j: (0, j), **res_kw),    # init   (resident)
            ],
            out_specs=pl.BlockSpec((tm, tn), lambda i, j: (i, j)),
            compiler_params=pltpu.CompilerParams(
                dimension_semantics=("parallel", "parallel"),
                vmem_limit_bytes=vmem_limit,
            ),
        )(states_p, inputs_p, a_pad, bt_pad, init_p)

    try:
        out_pad = run(residents_single_buffered)
    except Exception:
        out_pad = run(False)                            # fall back to default buffering

    # TODO(synk): when this cell is driven by a time-scan, keep the lane-padded
    # (batch, n_pad) layout as the recurrent state (input_output_aliases, in-place
    # update, pad columns stay exactly 0) and slice [:, :n_states] once at the end.
    next_states = out_pad[:batch, :n_states]
    return next_states, next_states


def make_params(key, n_states, hidden_size):
    """Deterministic, Xavier-uniform-style init matching recurrent_init()."""
    k1, k2 = jax.random.split(key)
    bt = math.sqrt(6.0 / (n_states + n_states))
    be = math.sqrt(6.0 / (n_states + hidden_size))
    transition = jax.random.uniform(k1, (n_states, n_states), jnp.float32, -bt, bt)
    emission = jax.random.uniform(k2, (n_states, hidden_size), jnp.float32, -be, be)
    init = jnp.zeros((n_states,), jnp.float32)
    return transition, emission, init


def reference_forward(inputs, states, transition, emission, init):
    A = jax.nn.softmax(transition, axis=1)
    B = jax.nn.softmax(emission, axis=1)
    return states @ A + inputs @ B.T + init


if __name__ == "__main__":
    batch, n_states, hidden_size = 16, 16, 32

    key = jax.random.PRNGKey(0)
    kp, ki, ks = jax.random.split(key, 3)
    transition, emission, init = make_params(kp, n_states, hidden_size)

    inputs = jax.random.normal(ki, (batch, hidden_size), jnp.float32)
    # states at t=0 come from get_initial_state -> zeros; use random to exercise both matmuls
    states = jax.random.normal(ks, (batch, n_states), jnp.float32)

    out, _ = base_hmm_cell_forward(inputs, states, transition, emission, init)
    out = jax.block_until_ready(out)

    ref = reference_forward(inputs, states, transition, emission, init)
    assert out.shape == (batch, n_states)
    assert jnp.allclose(out, ref, atol=1e-5, rtol=1e-5), "mismatch vs reference"

    print("KERNEL_OK")
</pallas_src>

<mosaic_0001>
module attributes {stable_mosaic.version = 11 : i64} {
  func.func @_row_softmax_kernel(%arg0: i32, %arg1: memref<16x16xf32, #tpu.memory_space<vmem>>, %arg2: memref<16x16xf32, #tpu.memory_space<vmem>>) attributes {dimension_semantics = [#tpu.dimension_semantics<parallel>], iteration_bounds = array<i64: 1>, scalar_prefetch = 0 : i64, scratch_operands = 0 : i64, tpu.core_type = #tpu.core_type<tc>, window_params = [{transform_indices = @transform_0, window_bounds = array<i64: 16, 16>}, {transform_indices = @transform_1, window_bounds = array<i64: 16, 16>}]} {
    %c0 = arith.constant 0 : index
    %c0_0 = arith.constant 0 : index
    %0 = vector.load %arg1[%c0, %c0_0] : memref<16x16xf32, #tpu.memory_space<vmem>>, vector<16x16xf32>
    %cst = arith.constant dense<0xFF800000> : vector<16xf32>
    %1 = vector.multi_reduction <maximumf>, %0, %cst [1] : vector<16x16xf32> to vector<16xf32>
    %2 = vector.shape_cast %1 : vector<16xf32> to vector<16x1xf32>
    %3 = vector.broadcast %2 : vector<16x1xf32> to vector<16x16xf32>
    %4 = arith.subf %0, %3 : vector<16x16xf32>
    %5 = math.exp %4 : vector<16x16xf32>
    %cst_1 = arith.constant dense<0.000000e+00> : vector<16xf32>
    %6 = vector.multi_reduction <add>, %5, %cst_1 [1] : vector<16x16xf32> to vector<16xf32>
    %7 = vector.shape_cast %6 : vector<16xf32> to vector<16x1xf32>
    %8 = vector.broadcast %7 : vector<16x1xf32> to vector<16x16xf32>
    %9 = arith.divf %5, %8 : vector<16x16xf32>
    %c0_2 = arith.constant 0 : index
    %c0_3 = arith.constant 0 : index
    %10 = vector.load %arg2[%c0_2, %c0_3] : memref<16x16xf32, #tpu.memory_space<vmem>>, vector<16x16xf32>
    tpu.vector_store %arg2[%c0_2, %c0_3], %9 {strides = array<i32>} : memref<16x16xf32, #tpu.memory_space<vmem>>, vector<16x16xf32>,
    return
  }
  func.func @transform_0(%arg0: i32) -> (i32, i32) {
    %c0_i32 = arith.constant 0 : i32
    %c0_i32_0 = arith.constant 0 : i32
    return %arg0, %c0_i32 : i32, i32
  }
  func.func @transform_1(%arg0: i32) -> (i32, i32) {
    %c0_i32 = arith.constant 0 : i32
    %c0_i32_0 = arith.constant 0 : i32
    return %arg0, %c0_i32 : i32, i32
  }
}

</mosaic_0001>

<llo_original>
// kernel: tpu_custom_call.1
$region0: #{tpu_custom_call.1}
  #allocation0 [shape = 'u32[]', space=smem, size = 0x4, offset = 0x4, fixed_abs, tag = 'smem constant byte address 0x4 - core index']
  #allocation1 [shape = 'u32[144,128]{1,0:T(1,128)}', space=vmem, size = 0x12000, scoped, tag = 'internal scratch']
  %s0 = inlined_call_operand.hbm [shape: f32[16,16], index: 0, kind: input, shape index: {}]
  %s1 = inlined_call_operand.hbm [shape: f32[16,16], index: 1, kind: output, shape index: {}]
  %s2 = sld [smem:[#allocation0]]
  $region18: #{tpu_custom_call.1} parent=0
    _
  %s4 = ssub.s32 1, %s2
  %s5 = scalar_select 0, %s4, %s2
  $region1: #{tpu_custom_call.1} parent=0
    #allocation2 [shape = 'u8[8192]{0}', space=vmem, size = 0x2000, scoped, tag = 'input window, operand 0, single buffered']
    #allocation3 [shape = 's32[1]{0}', space=sflag, size = 0x4, scoped, tag = 'scoped memory for tpu_custom_call.1']
    #allocation4 [shape = 's32[1]{0}', space=sflag, size = 0x4, scoped, tag = 'scoped memory for tpu_custom_call.1']
    #allocation5 [shape = 'u8[8192]{0}', space=vmem, size = 0x2000, scoped, tag = 'output window, operand 0, single buffered']
    %6 = vsyncpa [#allocation3], 0
    %7 = vsyncpa [#allocation4], 0
    // Predicated region
    $region2: #{tpu_custom_call.1} parent=1 // pred_check
      _
    $region3: #{tpu_custom_call.1} parent=1 // pred_check_branch
      %9 = sbr.rel (0) target = $region5
    $region4: #{tpu_custom_call.1} parent=1 // pred_region
      %s11 = ssub.s32 256, 256
      %12 = vsyncadd [#allocation3], %s11
      %s13 = sshll.u32 [#allocation2], 4
      %s14 = int_to_ptr.vmem [resolvable:$true] %s13
      %19 = dma.hbm_to_vmem [thread:$0]  %s0, 256, %s14, [#allocation3], 128, 128, 8
    $region5: #{tpu_custom_call.1} parent=1 // pred_fallthru
      _
    // Predicated region
    $region6: #{tpu_custom_call.1} parent=1 // pred_check
      _
    $region7: #{tpu_custom_call.1} parent=1 // pred_check_branch
      %21 = sbr.rel (0) target = $region9
    $region8: #{tpu_custom_call.1} parent=1 // pred_region
      %22 = dma.done [#allocation3], 256
    $region9: #{tpu_custom_call.1} parent=1 // pred_fallthru
      _
    %v23 = vld [vmem:[#allocation2] sm:$0xff]
    %v24 = vld [vmem:[#allocation2 + $0x8] sm:$0xff]
    %vm25 = vcmask 130048
    %v26 = vsel %vm25, %v23, -inf
    %27 = vmax.xlane.f32.xlu0 %v26
    %v28 = vpop.xlane.xlu0 %27
    %v29 = vsel %vm25, %v24, -inf
    %30 = vmax.xlane.f32.xlu0 %v29
    %v31 = vpop.xlane.xlu0 %30
    %v32 = vsub.f32 %v23, %v28
    %v33 = vsub.f32 %v24, %v31
    %v34 = vmul.f32 %v32, 1.442695
    %v35 = vpow.pop %v34
    %v36 = vmul.f32 %v33, 1.442695
    %v37 = vpow.pop %v36
    %v38 = vsel %vm25, %v35, 0.0
    %39 = vadd.xlane.f32.xlu0 %v38
    %v40 = vpop.xlane.xlu0 %39
    %v41 = vsel %vm25, %v37, 0.0
    %42 = vadd.xlane.f32.xlu0 %v41
    %v43 = vpop.xlane.xlu0 %42
    %v44 = vrcp.pop %v40
    %v45 = vmul.f32 %v35, %v44
    %v46 = vrcp.pop %v43
    %v47 = vmul.f32 %v37, %v46
    %48 = vst.msk [vmem:[#allocation5] sm:$0xff] %vm25, %v45
    %49 = vst.msk [vmem:[#allocation5 + $0x8] sm:$0xff] %vm25, %v47
    // Predicated region
    $region10: #{tpu_custom_call.1} parent=1 // pred_check
      _
    $region11: #{tpu_custom_call.1} parent=1 // pred_check_branch
      %51 = sbr.rel (0) target = $region13
    $region12: #{tpu_custom_call.1} parent=1 // pred_region
      %s53 = ssub.s32 256, 256
      %54 = vsyncadd [#allocation4], %s53
      %s55 = sshll.u32 [#allocation5], 4
      %s56 = int_to_ptr.vmem [resolvable:$true] %s55
      %61 = dma.vmem_to_hbm [thread:$0]  %s56, 256, %s1, [#allocation4], 128, 128, 8
    $region13: #{tpu_custom_call.1} parent=1 // pred_fallthru
      _
    // Predicated region
    $region14: #{tpu_custom_call.1} parent=1 // pred_check
      _
    $region15: #{tpu_custom_call.1} parent=1 // pred_check_branch
      %63 = sbr.rel (0) target = $region17
    $region16: #{tpu_custom_call.1} parent=1 // pred_region
      %64 = dma.done [#allocation4], 256
    $region17: #{tpu_custom_call.1} parent=1 // pred_fallthru
      _
    %65 = vsyncpa [#allocation3], 1
    %66 = vsyncpa [#allocation4], 1

</llo_original>
